<compile_context>
chip_gen: v7x
topology: tpu7x:2x2x1
jax: 0.10.0
libtpu: 0.0.40
codegen_flags: <defaults>
</compile_context>

<pallas_src>
import jax
import jax.numpy as jnp
from jax.experimental import pallas as pl
from jax.experimental.pallas import tpu as pltpu


def _gap_conv1x1_kernel(x_ref, w_ref, b_ref, o_ref):
    # x_ref: (1, C, H*W) activation block (producer dtype)
    # w_ref: (C, O)      f32 conv weight, pre-transposed, pre-scaled by 1/(H*W)
    # b_ref: (1, O)      f32 bias
    # o_ref: (1, O)      output row for this batch element
    x = x_ref[...].astype(jnp.float32)                  # (1, C, HW)
    s = jnp.sum(x, axis=-1, keepdims=True)              # (1, C, 1)  spatial sum (f32)
    # Tiny channel contraction on the VPU/XLU; bias added exactly once.
    out = jnp.sum(s * w_ref[...][None, :, :], axis=1) + b_ref[...]   # (1, O)
    o_ref[...] = out.astype(o_ref.dtype)


def gap_conv1x1(x_nchw, weight, bias):
    """x_nchw: (N, C, H, W); weight: (O, C, 1, 1); bias: (O,) -> (N, O, 1, 1).

    Equivalent to Conv2d(C, O, 1)(x.mean((2, 3), keepdim=True)).
    """
    N, C, H, W = x_nchw.shape
    O = weight.shape[0]
    HW = H * W

    # Lane-dense layout: HW on lanes, channels on sublanes.
    x3d = x_nchw.reshape(N, C, HW)
    # Fold the mean's 1/(H*W) into the pre-transposed f32 weight.
    w_t = weight.reshape(O, C).T.astype(jnp.float32) * (1.0 / float(HW))   # (C, O)
    b2d = bias.reshape(1, O).astype(jnp.float32)

    # Output stays in the producer's dtype (fine for an SE gate).
    out_dtype = x_nchw.dtype

    cost = pl.CostEstimate(
        flops=int(N * C * HW + 2 * N * C * O),
        transcendentals=0,
        bytes_accessed=int(
            x3d.size * x3d.dtype.itemsize
            + w_t.size * 4
            + b2d.size * 4
            + N * O * jnp.dtype(out_dtype).itemsize
        ),
    )

    out = pl.pallas_call(
        _gap_conv1x1_kernel,
        out_shape=jax.ShapeDtypeStruct((N, O), out_dtype),
        grid_spec=pltpu.PrefetchScalarGridSpec(
            num_scalar_prefetch=0,
            grid=(N,),
            in_specs=[
                pl.BlockSpec((1, C, HW), lambda n: (n, 0, 0)),
                pl.BlockSpec((C, O), lambda n: (0, 0)),
                pl.BlockSpec((1, O), lambda n: (0, 0)),
            ],
            out_specs=pl.BlockSpec((1, O), lambda n: (n, 0)),
        ),
        compiler_params=pltpu.CompilerParams(
            dimension_semantics=("parallel",),
        ),
        cost_estimate=cost,
    )(x3d, w_t, b2d)

    return out.reshape(N, O, 1, 1)


if __name__ == "__main__":
    key = jax.random.PRNGKey(0)
    k_x, k_w, k_b = jax.random.split(key, 3)

    # Module-implied shapes: Conv2d(144, 6, 1x1) applied to GAP of (1, 144, 56, 56).
    N, C, H, W, O = 1, 144, 56, 56, 6

    x = jax.random.normal(k_x, (N, C, H, W), dtype=jnp.float32)
    # Deterministic synthetic parameters (PyTorch-like uniform init scale).
    fan_in = C  # 1x1 kernel
    bound = 1.0 / (fan_in ** 0.5)
    weight = jax.random.uniform(k_w, (O, C, 1, 1), minval=-bound, maxval=bound,
                                dtype=jnp.float32)
    bias = jax.random.uniform(k_b, (O,), minval=-bound, maxval=bound,
                              dtype=jnp.float32)

    out = gap_conv1x1(x, weight, bias)
    out = jax.block_until_ready(out)

    # Reference check in plain JAX.
    ref = jnp.einsum("nc,oc->no", x.mean((2, 3)), weight.reshape(O, C)) + bias
    ref = ref.reshape(N, O, 1, 1)
    assert out.shape == (N, O, 1, 1)
    assert jnp.allclose(out, ref, atol=1e-4, rtol=1e-4)

    print("KERNEL_OK")
</pallas_src>

<mosaic_0001>
module attributes {stable_mosaic.version = 11 : i64} {
  func.func @_gap_conv1x1_kernel(%arg0: i32, %arg1: memref<1x144x3136xf32, #tpu.memory_space<vmem>>, %arg2: memref<144x6xf32, #tpu.memory_space<vmem>>, %arg3: memref<1x6xf32, #tpu.memory_space<vmem>>, %arg4: memref<1x6xf32, #tpu.memory_space<vmem>>) attributes {dimension_semantics = [#tpu.dimension_semantics<parallel>], iteration_bounds = array<i64: 1>, scalar_prefetch = 0 : i64, scratch_operands = 0 : i64, tpu.core_type = #tpu.core_type<tc>, window_params = [{transform_indices = @transform_0, window_bounds = array<i64: 1, 144, 3136>}, {pipeline_mode = #tpu.pipeline_mode<synchronous>, transform_indices = @transform_1, window_bounds = array<i64: 144, 6>}, {pipeline_mode = #tpu.pipeline_mode<synchronous>, transform_indices = @transform_2, window_bounds = array<i64: 1, 6>}, {transform_indices = @transform_3, window_bounds = array<i64: 1, 6>}]} {
    %c0 = arith.constant 0 : index
    %c0_0 = arith.constant 0 : index
    %c0_1 = arith.constant 0 : index
    %0 = vector.load %arg1[%c0, %c0_0, %c0_1] : memref<1x144x3136xf32, #tpu.memory_space<vmem>>, vector<1x144x3136xf32>
    %cst = arith.constant dense<0.000000e+00> : vector<1x144xf32>
    %1 = vector.multi_reduction <add>, %0, %cst [2] : vector<1x144x3136xf32> to vector<1x144xf32>
    %2 = vector.shape_cast %1 : vector<1x144xf32> to vector<1x144x1xf32>
    %c0_2 = arith.constant 0 : index
    %c0_3 = arith.constant 0 : index
    %3 = vector.load %arg2[%c0_2, %c0_3] : memref<144x6xf32, #tpu.memory_space<vmem>>, vector<144x6xf32>
    %4 = vector.shape_cast %3 : vector<144x6xf32> to vector<1x144x6xf32>
    %5 = vector.broadcast %2 : vector<1x144x1xf32> to vector<1x144x6xf32>
    %6 = arith.mulf %5, %4 : vector<1x144x6xf32>
    %cst_4 = arith.constant dense<0.000000e+00> : vector<1x6xf32>
    %7 = vector.multi_reduction <add>, %6, %cst_4 [1] : vector<1x144x6xf32> to vector<1x6xf32>
    %c0_5 = arith.constant 0 : index
    %c0_6 = arith.constant 0 : index
    %8 = vector.load %arg3[%c0_5, %c0_6] : memref<1x6xf32, #tpu.memory_space<vmem>>, vector<1x6xf32>
    %9 = arith.addf %7, %8 : vector<1x6xf32>
    %c0_7 = arith.constant 0 : index
    %c0_8 = arith.constant 0 : index
    %10 = vector.load %arg4[%c0_7, %c0_8] : memref<1x6xf32, #tpu.memory_space<vmem>>, vector<1x6xf32>
    tpu.vector_store %arg4[%c0_7, %c0_8], %9 {strides = array<i32>} : memref<1x6xf32, #tpu.memory_space<vmem>>, vector<1x6xf32>,
    return
  }
  func.func @transform_0(%arg0: i32) -> (i32, i32, i32) {
    %c0_i32 = arith.constant 0 : i32
    %c0_i32_0 = arith.constant 0 : i32
    %c0_i32_1 = arith.constant 0 : i32
    return %arg0, %c0_i32, %c0_i32_0 : i32, i32, i32
  }
  func.func @transform_1(%arg0: i32) -> (i32, i32) {
    %c0_i32 = arith.constant 0 : i32
    %c0_i32_0 = arith.constant 0 : i32
    %c0_i32_1 = arith.constant 0 : i32
    return %c0_i32, %c0_i32_0 : i32, i32
  }
  func.func @transform_2(%arg0: i32) -> (i32, i32) {
    %c0_i32 = arith.constant 0 : i32
    %c0_i32_0 = arith.constant 0 : i32
    %c0_i32_1 = arith.constant 0 : i32
    return %c0_i32, %c0_i32_0 : i32, i32
  }
  func.func @transform_3(%arg0: i32) -> (i32, i32) {
    %c0_i32 = arith.constant 0 : i32
    %c0_i32_0 = arith.constant 0 : i32
    return %arg0, %c0_i32 : i32, i32
  }
}

</mosaic_0001>

<llo_original>
// kernel: tpu_custom_call.1
$region0: #{tpu_custom_call.1}
  #allocation0 [shape = 'u32[]', space=smem, size = 0x4, offset = 0x4, fixed_abs, tag = 'smem constant byte address 0x4 - core index']
  #allocation1 [shape = 'u32[144,128]{1,0:T(1,128)}', space=vmem, size = 0x12000, scoped, tag = 'internal scratch']
  %s0 = inlined_call_operand.hbm [shape: f32[1,144,3136], index: 0, kind: input, shape index: {}]
  %s1 = inlined_call_operand.vmem [shape: f32[144,6], index: 1, kind: input, shape index: {}]
  %s2 = inlined_call_operand.hbm [shape: f32[1,6], index: 2, kind: input, shape index: {}]
  %s3 = inlined_call_operand.hbm [shape: f32[1,6], index: 3, kind: output, shape index: {}]
  %s4 = sld [smem:[#allocation0]]
  $region30: #{tpu_custom_call.1} parent=0
    _
  %s6 = ssub.s32 1, %s4
  %s7 = scalar_select 0, %s6, %s4
  $region1: #{tpu_custom_call.1} parent=0
    #allocation2 [shape = 'u8[1843200]{0}', space=vmem, size = 0x1c2000, scoped, tag = 'input window, operand 0, single buffered']
    #allocation3 [shape = 's32[1]{0}', space=sflag, size = 0x4, scoped, tag = 'scoped memory for tpu_custom_call.1']
    #allocation4 [shape = 's32[1]{0}', space=sflag, size = 0x4, scoped, tag = 'scoped memory for tpu_custom_call.1']
    #allocation5 [shape = 'u8[512]{0}', space=vmem, size = 0x400, scoped, tag = 'input window, operand 2, single buffered']
    #allocation6 [shape = 's32[1]{0}', space=sflag, size = 0x4, scoped, tag = 'scoped memory for tpu_custom_call.1']
    #allocation7 [shape = 'u8[512]{0}', space=vmem, size = 0x400, scoped, tag = 'output window, operand 0, single buffered']
    %8 = vsyncpa [#allocation3], 0
    %9 = vsyncpa [#allocation6], 0
    %10 = vsyncpa [#allocation4], 0
    // Predicated region
    $region2: #{tpu_custom_call.1} parent=1 // pred_check
      _
    $region3: #{tpu_custom_call.1} parent=1 // pred_check_branch
      %12 = sbr.rel (0) target = $region5
    $region4: #{tpu_custom_call.1} parent=1 // pred_region
      %s14 = ssub.s32 57600, 57600
      %15 = vsyncadd [#allocation3], %s14
      %s16 = sshll.u32 [#allocation2], 4
      %s17 = int_to_ptr.vmem [resolvable:$true] %s16
      %22 = dma.hbm_to_vmem [thread:$0]  %s0, 57600, %s17, [#allocation3], 3200, 3200, 200
    $region5: #{tpu_custom_call.1} parent=1 // pred_fallthru
      _
    // Predicated region
    $region6: #{tpu_custom_call.1} parent=1 // pred_check
      _
    $region7: #{tpu_custom_call.1} parent=1 // pred_check_branch
      %24 = sbr.rel (0) target = $region9
    $region8: #{tpu_custom_call.1} parent=1 // pred_region
      _
    $region9: #{tpu_custom_call.1} parent=1 // pred_fallthru
      _
    // Predicated region
    $region10: #{tpu_custom_call.1} parent=1 // pred_check
      _
    $region11: #{tpu_custom_call.1} parent=1 // pred_check_branch
      %26 = sbr.rel (0) target = $region13
    $region12: #{tpu_custom_call.1} parent=1 // pred_region
      %s28 = ssub.s32 16, 16
      %29 = vsyncadd [#allocation6], %s28
      %s31 = sshll.u32 [#allocation5], 4
      %s32 = int_to_ptr.vmem [resolvable:$true] %s31
      %34 = dma.hbm_to_vmem [thread:$0]  %s2, 16, %s32, [#allocation6]
    $region13: #{tpu_custom_call.1} parent=1 // pred_fallthru
      _
    // Predicated region
    $region14: #{tpu_custom_call.1} parent=1 // pred_check
      _
    $region15: #{tpu_custom_call.1} parent=1 // pred_check_branch
      %36 = sbr.rel (0) target = $region17
    $region16: #{tpu_custom_call.1} parent=1 // pred_region
      %37 = dma.done [#allocation3], 57600
    $region17: #{tpu_custom_call.1} parent=1 // pred_fallthru
      _
    // Predicated region
    $region18: #{tpu_custom_call.1} parent=1 // pred_check
      _
    $region19: #{tpu_custom_call.1} parent=1 // pred_check_branch
      %39 = sbr.rel (0) target = $region21
    $region20: #{tpu_custom_call.1} parent=1 // pred_region
      %40 = dma.done [#allocation6], 16
    $region21: #{tpu_custom_call.1} parent=1 // pred_fallthru
      _
    %v41 = vld [vmem:[#allocation2] sm:$0xff]
    %v42 = vld [vmem:[#allocation2 + $0x8] sm:$0xff]
    %v43 = vld [vmem:[#allocation2 + $0x10] sm:$0xff]
    %v44 = vld [vmem:[#allocation2 + $0x18] sm:$0xff]
    %v45 = vld [vmem:[#allocation2 + $0x20] sm:$0xff]
    %v46 = vld [vmem:[#allocation2 + $0x28] sm:$0xff]
    %v47 = vld [vmem:[#allocation2 + $0x30] sm:$0xff]
    %v48 = vld [vmem:[#allocation2 + $0x38] sm:$0xff]
    %v49 = vld [vmem:[#allocation2 + $0x40] sm:$0xff]
    %v50 = vld [vmem:[#allocation2 + $0x48] sm:$0xff]
    %v51 = vld [vmem:[#allocation2 + $0x50] sm:$0xff]
    %v52 = vld [vmem:[#allocation2 + $0x58] sm:$0xff]
    %v53 = vld [vmem:[#allocation2 + $0x60] sm:$0xff]
    %v54 = vld [vmem:[#allocation2 + $0x68] sm:$0xff]
    %v55 = vld [vmem:[#allocation2 + $0x70] sm:$0xff]
    %v56 = vld [vmem:[#allocation2 + $0x78] sm:$0xff]
    %v57 = vld [vmem:[#allocation2 + $0x80] sm:$0xff]
    %v58 = vld [vmem:[#allocation2 + $0x88] sm:$0xff]
    %v59 = vld [vmem:[#allocation2 + $0x90] sm:$0xff]
    %v60 = vld [vmem:[#allocation2 + $0x98] sm:$0xff]
    %v61 = vld [vmem:[#allocation2 + $0xa0] sm:$0xff]
    %v62 = vld [vmem:[#allocation2 + $0xa8] sm:$0xff]
    %v63 = vld [vmem:[#allocation2 + $0xb0] sm:$0xff]
    %v64 = vld [vmem:[#allocation2 + $0xb8] sm:$0xff]
    %v65 = vld [vmem:[#allocation2 + $0xc0] sm:$0xff]
    %v66 = vld [vmem:[#allocation2 + $0xc8] sm:$0xff]
    %v67 = vld [vmem:[#allocation2 + $0xd0] sm:$0xff]
    %v68 = vld [vmem:[#allocation2 + $0xd8] sm:$0xff]
    %v69 = vld [vmem:[#allocation2 + $0xe0] sm:$0xff]
    %v70 = vld [vmem:[#allocation2 + $0xe8] sm:$0xff]
    %v71 = vld [vmem:[#allocation2 + $0xf0] sm:$0xff]
    %v72 = vld [vmem:[#allocation2 + $0xf8] sm:$0xff]
    %v73 = vld [vmem:[#allocation2 + $0x100] sm:$0xff]
    %v74 = vld [vmem:[#allocation2 + $0x108] sm:$0xff]
    %v75 = vld [vmem:[#allocation2 + $0x110] sm:$0xff]
    %v76 = vld [vmem:[#allocation2 + $0x118] sm:$0xff]
    %v77 = vld [vmem:[#allocation2 + $0x120] sm:$0xff]
    %v78 = vld [vmem:[#allocation2 + $0x128] sm:$0xff]
    %v79 = vld [vmem:[#allocation2 + $0x130] sm:$0xff]
    %v80 = vld [vmem:[#allocation2 + $0x138] sm:$0xff]
    %v81 = vld [vmem:[#allocation2 + $0x140] sm:$0xff]
    %v82 = vld [vmem:[#allocation2 + $0x148] sm:$0xff]
    %v83 = vld [vmem:[#allocation2 + $0x150] sm:$0xff]
    %v84 = vld [vmem:[#allocation2 + $0x158] sm:$0xff]
    %v85 = vld [vmem:[#allocation2 + $0x160] sm:$0xff]
    %v86 = vld [vmem:[#allocation2 + $0x168] sm:$0xff]
    %v87 = vld [vmem:[#allocation2 + $0x170] sm:$0xff]
    %v88 = vld [vmem:[#allocation2 + $0x178] sm:$0xff]
    %v89 = vld [vmem:[#allocation2 + $0x180] sm:$0xff]
    %v90 = vld [vmem:[#allocation2 + $0x188] sm:$0xff]
    %v91 = vld [vmem:[#allocation2 + $0x190] sm:$0xff]
    %v92 = vld [vmem:[#allocation2 + $0x198] sm:$0xff]
    %v93 = vld [vmem:[#allocation2 + $0x1a0] sm:$0xff]
    %v94 = vld [vmem:[#allocation2 + $0x1a8] sm:$0xff]
    %v95 = vld [vmem:[#allocation2 + $0x1b0] sm:$0xff]
    %v96 = vld [vmem:[#allocation2 + $0x1b8] sm:$0xff]
    %v97 = vld [vmem:[#allocation2 + $0x1c0] sm:$0xff]
    %v98 = vld [vmem:[#allocation2 + $0x1c8] sm:$0xff]
    %v99 = vld [vmem:[#allocation2 + $0x1d0] sm:$0xff]
    %v100 = vld [vmem:[#allocation2 + $0x1d8] sm:$0xff]
    %v101 = vld [vmem:[#allocation2 + $0x1e0] sm:$0xff]
    %v102 = vld [vmem:[#allocation2 + $0x1e8] sm:$0xff]
    %v103 = vld [vmem:[#allocation2 + $0x1f0] sm:$0xff]
    %v104 = vld [vmem:[#allocation2 + $0x1f8] sm:$0xff]
    %v105 = vld [vmem:[#allocation2 + $0x200] sm:$0xff]
    %v106 = vld [vmem:[#allocation2 + $0x208] sm:$0xff]
    %v107 = vld [vmem:[#allocation2 + $0x210] sm:$0xff]
    %v108 = vld [vmem:[#allocation2 + $0x218] sm:$0xff]
    %v109 = vld [vmem:[#allocation2 + $0x220] sm:$0xff]
    %v110 = vld [vmem:[#allocation2 + $0x228] sm:$0xff]
    %v111 = vld [vmem:[#allocation2 + $0x230] sm:$0xff]
    %v112 = vld [vmem:[#allocation2 + $0x238] sm:$0xff]
    %v113 = vld [vmem:[#allocation2 + $0x240] sm:$0xff]
    %v114 = vld [vmem:[#allocation2 + $0x248] sm:$0xff]
    %v115 = vld [vmem:[#allocation2 + $0x250] sm:$0xff]
    %v116 = vld [vmem:[#allocation2 + $0x258] sm:$0xff]
    %v117 = vld [vmem:[#allocation2 + $0x260] sm:$0xff]
    %v118 = vld [vmem:[#allocation2 + $0x268] sm:$0xff]
    %v119 = vld [vmem:[#allocation2 + $0x270] sm:$0xff]
    %v120 = vld [vmem:[#allocation2 + $0x278] sm:$0xff]
    %v121 = vld [vmem:[#allocation2 + $0x280] sm:$0xff]
    %v122 = vld [vmem:[#allocation2 + $0x288] sm:$0xff]
    %v123 = vld [vmem:[#allocation2 + $0x290] sm:$0xff]
    %v124 = vld [vmem:[#allocation2 + $0x298] sm:$0xff]
    %v125 = vld [vmem:[#allocation2 + $0x2a0] sm:$0xff]
    %v126 = vld [vmem:[#allocation2 + $0x2a8] sm:$0xff]
    %v127 = vld [vmem:[#allocation2 + $0x2b0] sm:$0xff]
    %v128 = vld [vmem:[#allocation2 + $0x2b8] sm:$0xff]
    %v129 = vld [vmem:[#allocation2 + $0x2c0] sm:$0xff]
    %v130 = vld [vmem:[#allocation2 + $0x2c8] sm:$0xff]
    %v131 = vld [vmem:[#allocation2 + $0x2d0] sm:$0xff]
    %v132 = vld [vmem:[#allocation2 + $0x2d8] sm:$0xff]
    %v133 = vld [vmem:[#allocation2 + $0x2e0] sm:$0xff]
    %v134 = vld [vmem:[#allocation2 + $0x2e8] sm:$0xff]
    %v135 = vld [vmem:[#allocation2 + $0x2f0] sm:$0xff]
    %v136 = vld [vmem:[#allocation2 + $0x2f8] sm:$0xff]
    %v137 = vld [vmem:[#allocation2 + $0x300] sm:$0xff]
    %v138 = vld [vmem:[#allocation2 + $0x308] sm:$0xff]
    %v139 = vld [vmem:[#allocation2 + $0x310] sm:$0xff]
    %v140 = vld [vmem:[#allocation2 + $0x318] sm:$0xff]
    %v141 = vld [vmem:[#allocation2 + $0x320] sm:$0xff]
    %v142 = vld [vmem:[#allocation2 + $0x328] sm:$0xff]
    %v143 = vld [vmem:[#allocation2 + $0x330] sm:$0xff]
    %v144 = vld [vmem:[#allocation2 + $0x338] sm:$0xff]
    %v145 = vld [vmem:[#allocation2 + $0x340] sm:$0xff]
    %v146 = vld [vmem:[#allocation2 + $0x348] sm:$0xff]
    %v147 = vld [vmem:[#allocation2 + $0x350] sm:$0xff]
    %v148 = vld [vmem:[#allocation2 + $0x358] sm:$0xff]
    %v149 = vld [vmem:[#allocation2 + $0x360] sm:$0xff]
    %v150 = vld [vmem:[#allocation2 + $0x368] sm:$0xff]
    %v151 = vld [vmem:[#allocation2 + $0x370] sm:$0xff]
    %v152 = vld [vmem:[#allocation2 + $0x378] sm:$0xff]
    %v153 = vld [vmem:[#allocation2 + $0x380] sm:$0xff]
    %v154 = vld [vmem:[#allocation2 + $0x388] sm:$0xff]
    %v155 = vld [vmem:[#allocation2 + $0x390] sm:$0xff]
    %v156 = vld [vmem:[#allocation2 + $0x398] sm:$0xff]
    %v157 = vld [vmem:[#allocation2 + $0x3a0] sm:$0xff]
    %v158 = vld [vmem:[#allocation2 + $0x3a8] sm:$0xff]
    %v159 = vld [vmem:[#allocation2 + $0x3b0] sm:$0xff]
    %v160 = vld [vmem:[#allocation2 + $0x3b8] sm:$0xff]
    %v161 = vld [vmem:[#allocation2 + $0x3c0] sm:$0xff]
    %v162 = vld [vmem:[#allocation2 + $0x3c8] sm:$0xff]
    %v163 = vld [vmem:[#allocation2 + $0x3d0] sm:$0xff]
    %v164 = vld [vmem:[#allocation2 + $0x3d8] sm:$0xff]
    %v165 = vld [vmem:[#allocation2 + $0x3e0] sm:$0xff]
    %v166 = vld [vmem:[#allocation2 + $0x3e8] sm:$0xff]
    %v167 = vld [vmem:[#allocation2 + $0x3f0] sm:$0xff]
    %v168 = vld [vmem:[#allocation2 + $0x3f8] sm:$0xff]
    %v169 = vld [vmem:[#allocation2 + $0x400] sm:$0xff]
    %v170 = vld [vmem:[#allocation2 + $0x408] sm:$0xff]
    %v171 = vld [vmem:[#allocation2 + $0x410] sm:$0xff]
    %v172 = vld [vmem:[#allocation2 + $0x418] sm:$0xff]
    %v173 = vld [vmem:[#allocation2 + $0x420] sm:$0xff]
    %v174 = vld [vmem:[#allocation2 + $0x428] sm:$0xff]
    %v175 = vld [vmem:[#allocation2 + $0x430] sm:$0xff]
    %v176 = vld [vmem:[#allocation2 + $0x438] sm:$0xff]
    %v177 = vld [vmem:[#allocation2 + $0x440] sm:$0xff]
    %v178 = vld [vmem:[#allocation2 + $0x448] sm:$0xff]
    %v179 = vld [vmem:[#allocation2 + $0x450] sm:$0xff]
    %v180 = vld [vmem:[#allocation2 + $0x458] sm:$0xff]
    %v181 = vld [vmem:[#allocation2 + $0x460] sm:$0xff]
    %v182 = vld [vmem:[#allocation2 + $0x468] sm:$0xff]
    %v183 = vld [vmem:[#allocation2 + $0x470] sm:$0xff]
    %v184 = vld [vmem:[#allocation2 + $0x478] sm:$0xff]
    %v185 = vld [vmem:[#allocation2 + $0x480] sm:$0xff]
    %v186 = vld [vmem:[#allocation2 + $0x488] sm:$0xff]
    %v187 = vld [vmem:[#allocation2 + $0x490] sm:$0xff]
    %v188 = vld [vmem:[#allocation2 + $0x498] sm:$0xff]
    %v189 = vld [vmem:[#allocation2 + $0x4a0] sm:$0xff]
    %v190 = vld [vmem:[#allocation2 + $0x4a8] sm:$0xff]
    %v191 = vld [vmem:[#allocation2 + $0x4b0] sm:$0xff]
    %v192 = vld [vmem:[#allocation2 + $0x4b8] sm:$0xff]
    %v193 = vld [vmem:[#allocation2 + $0x4c0] sm:$0xff]
    %v194 = vld [vmem:[#allocation2 + $0x4c8] sm:$0xff]
    %v195 = vld [vmem:[#allocation2 + $0x4d0] sm:$0xff]
    %v196 = vld [vmem:[#allocation2 + $0x4d8] sm:$0xff]
    %v197 = vld [vmem:[#allocation2 + $0x4e0] sm:$0xff]
    %v198 = vld [vmem:[#allocation2 + $0x4e8] sm:$0xff]
    %v199 = vld [vmem:[#allocation2 + $0x4f0] sm:$0xff]
    %v200 = vld [vmem:[#allocation2 + $0x4f8] sm:$0xff]
    %v201 = vld [vmem:[#allocation2 + $0x500] sm:$0xff]
    %v202 = vld [vmem:[#allocation2 + $0x508] sm:$0xff]
    %v203 = vld [vmem:[#allocation2 + $0x510] sm:$0xff]
    %v204 = vld [vmem:[#allocation2 + $0x518] sm:$0xff]
    %v205 = vld [vmem:[#allocation2 + $0x520] sm:$0xff]
    %v206 = vld [vmem:[#allocation2 + $0x528] sm:$0xff]
    %v207 = vld [vmem:[#allocation2 + $0x530] sm:$0xff]
    %v208 = vld [vmem:[#allocation2 + $0x538] sm:$0xff]
    %v209 = vld [vmem:[#allocation2 + $0x540] sm:$0xff]
    %v210 = vld [vmem:[#allocation2 + $0x548] sm:$0xff]
    %v211 = vld [vmem:[#allocation2 + $0x550] sm:$0xff]
    %v212 = vld [vmem:[#allocation2 + $0x558] sm:$0xff]
    %v213 = vld [vmem:[#allocation2 + $0x560] sm:$0xff]
    %v214 = vld [vmem:[#allocation2 + $0x568] sm:$0xff]
    %v215 = vld [vmem:[#allocation2 + $0x570] sm:$0xff]
    %v216 = vld [vmem:[#allocation2 + $0x578] sm:$0xff]
    %v217 = vld [vmem:[#allocation2 + $0x580] sm:$0xff]
    %v218 = vld [vmem:[#allocation2 + $0x588] sm:$0xff]
    %v219 = vld [vmem:[#allocation2 + $0x590] sm:$0xff]
    %v220 = vld [vmem:[#allocation2 + $0x598] sm:$0xff]
    %v221 = vld [vmem:[#allocation2 + $0x5a0] sm:$0xff]
    %v222 = vld [vmem:[#allocation2 + $0x5a8] sm:$0xff]
    %v223 = vld [vmem:[#allocation2 + $0x5b0] sm:$0xff]
    %v224 = vld [vmem:[#allocation2 + $0x5b8] sm:$0xff]
    %v225 = vld [vmem:[#allocation2 + $0x5c0] sm:$0xff]
    %v226 = vld [vmem:[#allocation2 + $0x5c8] sm:$0xff]
    %v227 = vld [vmem:[#allocation2 + $0x5d0] sm:$0xff]
    %v228 = vld [vmem:[#allocation2 + $0x5d8] sm:$0xff]
    %v229 = vld [vmem:[#allocation2 + $0x5e0] sm:$0xff]
    %v230 = vld [vmem:[#allocation2 + $0x5e8] sm:$0xff]
    %v231 = vld [vmem:[#allocation2 + $0x5f0] sm:$0xff]
    %v232 = vld [vmem:[#allocation2 + $0x5f8] sm:$0xff]
    %v233 = vld [vmem:[#allocation2 + $0x600] sm:$0xff]
    %v234 = vld [vmem:[#allocation2 + $0x608] sm:$0xff]
    %v235 = vld [vmem:[#allocation2 + $0x610] sm:$0xff]
    %v236 = vld [vmem:[#allocation2 + $0x618] sm:$0xff]
    %v237 = vld [vmem:[#allocation2 + $0x620] sm:$0xff]
    %v238 = vld [vmem:[#allocation2 + $0x628] sm:$0xff]
    %v239 = vld [vmem:[#allocation2 + $0x630] sm:$0xff]
    %v240 = vld [vmem:[#allocation2 + $0x638] sm:$0xff]
    %v241 = vld [vmem:[#allocation2 + $0x640] sm:$0xff]
    %v242 = vld [vmem:[#allocation2 + $0x648] sm:$0xff]
    %v243 = vld [vmem:[#allocation2 + $0x650] sm:$0xff]
    %v244 = vld [vmem:[#allocation2 + $0x658] sm:$0xff]
    %v245 = vld [vmem:[#allocation2 + $0x660] sm:$0xff]
    %v246 = vld [vmem:[#allocation2 + $0x668] sm:$0xff]
    %v247 = vld [vmem:[#allocation2 + $0x670] sm:$0xff]
    %v248 = vld [vmem:[#allocation2 + $0x678] sm:$0xff]
    %v249 = vld [vmem:[#allocation2 + $0x680] sm:$0xff]
    %v250 = vld [vmem:[#allocation2 + $0x688] sm:$0xff]
    %v251 = vld [vmem:[#allocation2 + $0x690] sm:$0xff]
    %v252 = vld [vmem:[#allocation2 + $0x698] sm:$0xff]
    %v253 = vld [vmem:[#allocation2 + $0x6a0] sm:$0xff]
    %v254 = vld [vmem:[#allocation2 + $0x6a8] sm:$0xff]
    %v255 = vld [vmem:[#allocation2 + $0x6b0] sm:$0xff]
    %v256 = vld [vmem:[#allocation2 + $0x6b8] sm:$0xff]
    %v257 = vld [vmem:[#allocation2 + $0x6c0] sm:$0xff]
    %v258 = vld [vmem:[#allocation2 + $0x6c8] sm:$0xff]
    %v259 = vld [vmem:[#allocation2 + $0x6d0] sm:$0xff]
    %v260 = vld [vmem:[#allocation2 + $0x6d8] sm:$0xff]
    %v261 = vld [vmem:[#allocation2 + $0x6e0] sm:$0xff]
    %v262 = vld [vmem:[#allocation2 + $0x6e8] sm:$0xff]
    %v263 = vld [vmem:[#allocation2 + $0x6f0] sm:$0xff]
    %v264 = vld [vmem:[#allocation2 + $0x6f8] sm:$0xff]
    %v265 = vld [vmem:[#allocation2 + $0x700] sm:$0xff]
    %v266 = vld [vmem:[#allocation2 + $0x708] sm:$0xff]
    %v267 = vld [vmem:[#allocation2 + $0x710] sm:$0xff]
    %v268 = vld [vmem:[#allocation2 + $0x718] sm:$0xff]
    %v269 = vld [vmem:[#allocation2 + $0x720] sm:$0xff]
    %v270 = vld [vmem:[#allocation2 + $0x728] sm:$0xff]
    %v271 = vld [vmem:[#allocation2 + $0x730] sm:$0xff]
    %v272 = vld [vmem:[#allocation2 + $0x738] sm:$0xff]
    %v273 = vld [vmem:[#allocation2 + $0x740] sm:$0xff]
    %v274 = vld [vmem:[#allocation2 + $0x748] sm:$0xff]
    %v275 = vld [vmem:[#allocation2 + $0x750] sm:$0xff]
    %v276 = vld [vmem:[#allocation2 + $0x758] sm:$0xff]
    %v277 = vld [vmem:[#allocation2 + $0x760] sm:$0xff]
    %v278 = vld [vmem:[#allocation2 + $0x768] sm:$0xff]
    %v279 = vld [vmem:[#allocation2 + $0x770] sm:$0xff]
    %v280 = vld [vmem:[#allocation2 + $0x778] sm:$0xff]
    %v281 = vld [vmem:[#allocation2 + $0x780] sm:$0xff]
    %v282 = vld [vmem:[#allocation2 + $0x788] sm:$0xff]
    %v283 = vld [vmem:[#allocation2 + $0x790] sm:$0xff]
    %v284 = vld [vmem:[#allocation2 + $0x798] sm:$0xff]
    %v285 = vld [vmem:[#allocation2 + $0x7a0] sm:$0xff]
    %v286 = vld [vmem:[#allocation2 + $0x7a8] sm:$0xff]
    %v287 = vld [vmem:[#allocation2 + $0x7b0] sm:$0xff]
    %v288 = vld [vmem:[#allocation2 + $0x7b8] sm:$0xff]
    %v289 = vld [vmem:[#allocation2 + $0x7c0] sm:$0xff]
    %v290 = vld [vmem:[#allocation2 + $0x7c8] sm:$0xff]
    %v291 = vld [vmem:[#allocation2 + $0x7d0] sm:$0xff]
    %v292 = vld [vmem:[#allocation2 + $0x7d8] sm:$0xff]
    %v293 = vld [vmem:[#allocation2 + $0x7e0] sm:$0xff]
    %v294 = vld [vmem:[#allocation2 + $0x7e8] sm:$0xff]
    %v295 = vld [vmem:[#allocation2 + $0x7f0] sm:$0xff]
    %v296 = vld [vmem:[#allocation2 + $0x7f8] sm:$0xff]
    %v297 = vld [vmem:[#allocation2 + $0x800] sm:$0xff]
    %v298 = vld [vmem:[#allocation2 + $0x808] sm:$0xff]
    %v299 = vld [vmem:[#allocation2 + $0x810] sm:$0xff]
    %v300 = vld [vmem:[#allocation2 + $0x818] sm:$0xff]
    %v301 = vld [vmem:[#allocation2 + $0x820] sm:$0xff]
    %v302 = vld [vmem:[#allocation2 + $0x828] sm:$0xff]
    %v303 = vld [vmem:[#allocation2 + $0x830] sm:$0xff]
    %v304 = vld [vmem:[#allocation2 + $0x838] sm:$0xff]
    %v305 = vld [vmem:[#allocation2 + $0x840] sm:$0xff]
    %v306 = vld [vmem:[#allocation2 + $0x848] sm:$0xff]
    %v307 = vld [vmem:[#allocation2 + $0x850] sm:$0xff]
    %v308 = vld [vmem:[#allocation2 + $0x858] sm:$0xff]
    %v309 = vld [vmem:[#allocation2 + $0x860] sm:$0xff]
    %v310 = vld [vmem:[#allocation2 + $0x868] sm:$0xff]
    %v311 = vld [vmem:[#allocation2 + $0x870] sm:$0xff]
    %v312 = vld [vmem:[#allocation2 + $0x878] sm:$0xff]
    %v313 = vld [vmem:[#allocation2 + $0x880] sm:$0xff]
    %v314 = vld [vmem:[#allocation2 + $0x888] sm:$0xff]
    %v315 = vld [vmem:[#allocation2 + $0x890] sm:$0xff]
    %v316 = vld [vmem:[#allocation2 + $0x898] sm:$0xff]
    %v317 = vld [vmem:[#allocation2 + $0x8a0] sm:$0xff]
    %v318 = vld [vmem:[#allocation2 + $0x8a8] sm:$0xff]
    %v319 = vld [vmem:[#allocation2 + $0x8b0] sm:$0xff]
    %v320 = vld [vmem:[#allocation2 + $0x8b8] sm:$0xff]
    %v321 = vld [vmem:[#allocation2 + $0x8c0] sm:$0xff]
    %v322 = vld [vmem:[#allocation2 + $0x8c8] sm:$0xff]
    %v323 = vld [vmem:[#allocation2 + $0x8d0] sm:$0xff]
    %v324 = vld [vmem:[#allocation2 + $0x8d8] sm:$0xff]
    %v325 = vld [vmem:[#allocation2 + $0x8e0] sm:$0xff]
    %v326 = vld [vmem:[#allocation2 + $0x8e8] sm:$0xff]
    %v327 = vld [vmem:[#allocation2 + $0x8f0] sm:$0xff]
    %v328 = vld [vmem:[#allocation2 + $0x8f8] sm:$0xff]
    %v329 = vld [vmem:[#allocation2 + $0x900] sm:$0xff]
    %v330 = vld [vmem:[#allocation2 + $0x908] sm:$0xff]
    %v331 = vld [vmem:[#allocation2 + $0x910] sm:$0xff]
    %v332 = vld [vmem:[#allocation2 + $0x918] sm:$0xff]
    %v333 = vld [vmem:[#allocation2 + $0x920] sm:$0xff]
    %v334 = vld [vmem:[#allocation2 + $0x928] sm:$0xff]
    %v335 = vld [vmem:[#allocation2 + $0x930] sm:$0xff]
    %v336 = vld [vmem:[#allocation2 + $0x938] sm:$0xff]
    %v337 = vld [vmem:[#allocation2 + $0x940] sm:$0xff]
    %v338 = vld [vmem:[#allocation2 + $0x948] sm:$0xff]
    %v339 = vld [vmem:[#allocation2 + $0x950] sm:$0xff]
    %v340 = vld [vmem:[#allocation2 + $0x958] sm:$0xff]
    %v341 = vld [vmem:[#allocation2 + $0x960] sm:$0xff]
    %v342 = vld [vmem:[#allocation2 + $0x968] sm:$0xff]
    %v343 = vld [vmem:[#allocation2 + $0x970] sm:$0xff]
    %v344 = vld [vmem:[#allocation2 + $0x978] sm:$0xff]
    %v345 = vld [vmem:[#allocation2 + $0x980] sm:$0xff]
    %v346 = vld [vmem:[#allocation2 + $0x988] sm:$0xff]
    %v347 = vld [vmem:[#allocation2 + $0x990] sm:$0xff]
    %v348 = vld [vmem:[#allocation2 + $0x998] sm:$0xff]
    %v349 = vld [vmem:[#allocation2 + $0x9a0] sm:$0xff]
    %v350 = vld [vmem:[#allocation2 + $0x9a8] sm:$0xff]
    %v351 = vld [vmem:[#allocation2 + $0x9b0] sm:$0xff]
    %v352 = vld [vmem:[#allocation2 + $0x9b8] sm:$0xff]
    %v353 = vld [vmem:[#allocation2 + $0x9c0] sm:$0xff]
    %v354 = vld [vmem:[#allocation2 + $0x9c8] sm:$0xff]
    %v355 = vld [vmem:[#allocation2 + $0x9d0] sm:$0xff]
    %v356 = vld [vmem:[#allocation2 + $0x9d8] sm:$0xff]
    %v357 = vld [vmem:[#allocation2 + $0x9e0] sm:$0xff]
    %v358 = vld [vmem:[#allocation2 + $0x9e8] sm:$0xff]
    %v359 = vld [vmem:[#allocation2 + $0x9f0] sm:$0xff]
    %v360 = vld [vmem:[#allocation2 + $0x9f8] sm:$0xff]
    %v361 = vld [vmem:[#allocation2 + $0xa00] sm:$0xff]
    %v362 = vld [vmem:[#allocation2 + $0xa08] sm:$0xff]
    %v363 = vld [vmem:[#allocation2 + $0xa10] sm:$0xff]
    %v364 = vld [vmem:[#allocation2 + $0xa18] sm:$0xff]
    %v365 = vld [vmem:[#allocation2 + $0xa20] sm:$0xff]
    %v366 = vld [vmem:[#allocation2 + $0xa28] sm:$0xff]
    %v367 = vld [vmem:[#allocation2 + $0xa30] sm:$0xff]
    %v368 = vld [vmem:[#allocation2 + $0xa38] sm:$0xff]
    %v369 = vld [vmem:[#allocation2 + $0xa40] sm:$0xff]
    %v370 = vld [vmem:[#allocation2 + $0xa48] sm:$0xff]
    %v371 = vld [vmem:[#allocation2 + $0xa50] sm:$0xff]
    %v372 = vld [vmem:[#allocation2 + $0xa58] sm:$0xff]
    %v373 = vld [vmem:[#allocation2 + $0xa60] sm:$0xff]
    %v374 = vld [vmem:[#allocation2 + $0xa68] sm:$0xff]
    %v375 = vld [vmem:[#allocation2 + $0xa70] sm:$0xff]
    %v376 = vld [vmem:[#allocation2 + $0xa78] sm:$0xff]
    %v377 = vld [vmem:[#allocation2 + $0xa80] sm:$0xff]
    %v378 = vld [vmem:[#allocation2 + $0xa88] sm:$0xff]
    %v379 = vld [vmem:[#allocation2 + $0xa90] sm:$0xff]
    %v380 = vld [vmem:[#allocation2 + $0xa98] sm:$0xff]
    %v381 = vld [vmem:[#allocation2 + $0xaa0] sm:$0xff]
    %v382 = vld [vmem:[#allocation2 + $0xaa8] sm:$0xff]
    %v383 = vld [vmem:[#allocation2 + $0xab0] sm:$0xff]
    %v384 = vld [vmem:[#allocation2 + $0xab8] sm:$0xff]
    %v385 = vld [vmem:[#allocation2 + $0xac0] sm:$0xff]
    %v386 = vld [vmem:[#allocation2 + $0xac8] sm:$0xff]
    %v387 = vld [vmem:[#allocation2 + $0xad0] sm:$0xff]
    %v388 = vld [vmem:[#allocation2 + $0xad8] sm:$0xff]
    %v389 = vld [vmem:[#allocation2 + $0xae0] sm:$0xff]
    %v390 = vld [vmem:[#allocation2 + $0xae8] sm:$0xff]
    %v391 = vld [vmem:[#allocation2 + $0xaf0] sm:$0xff]
    %v392 = vld [vmem:[#allocation2 + $0xaf8] sm:$0xff]
    %v393 = vld [vmem:[#allocation2 + $0xb00] sm:$0xff]
    %v394 = vld [vmem:[#allocation2 + $0xb08] sm:$0xff]
    %v395 = vld [vmem:[#allocation2 + $0xb10] sm:$0xff]
    %v396 = vld [vmem:[#allocation2 + $0xb18] sm:$0xff]
    %v397 = vld [vmem:[#allocation2 + $0xb20] sm:$0xff]
    %v398 = vld [vmem:[#allocation2 + $0xb28] sm:$0xff]
    %v399 = vld [vmem:[#allocation2 + $0xb30] sm:$0xff]
    %v400 = vld [vmem:[#allocation2 + $0xb38] sm:$0xff]
    %v401 = vld [vmem:[#allocation2 + $0xb40] sm:$0xff]
    %v402 = vld [vmem:[#allocation2 + $0xb48] sm:$0xff]
    %v403 = vld [vmem:[#allocation2 + $0xb50] sm:$0xff]
    %v404 = vld [vmem:[#allocation2 + $0xb58] sm:$0xff]
    %v405 = vld [vmem:[#allocation2 + $0xb60] sm:$0xff]
    %v406 = vld [vmem:[#allocation2 + $0xb68] sm:$0xff]
    %v407 = vld [vmem:[#allocation2 + $0xb70] sm:$0xff]
    %v408 = vld [vmem:[#allocation2 + $0xb78] sm:$0xff]
    %v409 = vld [vmem:[#allocation2 + $0xb80] sm:$0xff]
    %v410 = vld [vmem:[#allocation2 + $0xb88] sm:$0xff]
    %v411 = vld [vmem:[#allocation2 + $0xb90] sm:$0xff]
    %v412 = vld [vmem:[#allocation2 + $0xb98] sm:$0xff]
    %v413 = vld [vmem:[#allocation2 + $0xba0] sm:$0xff]
    %v414 = vld [vmem:[#allocation2 + $0xba8] sm:$0xff]
    %v415 = vld [vmem:[#allocation2 + $0xbb0] sm:$0xff]
    %v416 = vld [vmem:[#allocation2 + $0xbb8] sm:$0xff]
    %v417 = vld [vmem:[#allocation2 + $0xbc0] sm:$0xff]
    %v418 = vld [vmem:[#allocation2 + $0xbc8] sm:$0xff]
    %v419 = vld [vmem:[#allocation2 + $0xbd0] sm:$0xff]
    %v420 = vld [vmem:[#allocation2 + $0xbd8] sm:$0xff]
    %v421 = vld [vmem:[#allocation2 + $0xbe0] sm:$0xff]
    %v422 = vld [vmem:[#allocation2 + $0xbe8] sm:$0xff]
    %v423 = vld [vmem:[#allocation2 + $0xbf0] sm:$0xff]
    %v424 = vld [vmem:[#allocation2 + $0xbf8] sm:$0xff]
    %v425 = vld [vmem:[#allocation2 + $0xc00] sm:$0xff]
    %v426 = vld [vmem:[#allocation2 + $0xc08] sm:$0xff]
    %v427 = vld [vmem:[#allocation2 + $0xc10] sm:$0xff]
    %v428 = vld [vmem:[#allocation2 + $0xc18] sm:$0xff]
    %v429 = vld [vmem:[#allocation2 + $0xc20] sm:$0xff]
    %v430 = vld [vmem:[#allocation2 + $0xc28] sm:$0xff]
    %v431 = vld [vmem:[#allocation2 + $0xc30] sm:$0xff]
    %v432 = vld [vmem:[#allocation2 + $0xc38] sm:$0xff]
    %v433 = vld [vmem:[#allocation2 + $0xc40] sm:$0xff]
    %v434 = vld [vmem:[#allocation2 + $0xc48] sm:$0xff]
    %v435 = vld [vmem:[#allocation2 + $0xc50] sm:$0xff]
    %v436 = vld [vmem:[#allocation2 + $0xc58] sm:$0xff]
    %v437 = vld [vmem:[#allocation2 + $0xc60] sm:$0xff]
    %v438 = vld [vmem:[#allocation2 + $0xc68] sm:$0xff]
    %v439 = vld [vmem:[#allocation2 + $0xc70] sm:$0xff]
    %v440 = vld [vmem:[#allocation2 + $0xc78] sm:$0xff]
    %v441 = vld [vmem:[#allocation2 + $0xc80] sm:$0xff]
    %v442 = vld [vmem:[#allocation2 + $0xc88] sm:$0xff]
    %v443 = vld [vmem:[#allocation2 + $0xc90] sm:$0xff]
    %v444 = vld [vmem:[#allocation2 + $0xc98] sm:$0xff]
    %v445 = vld [vmem:[#allocation2 + $0xca0] sm:$0xff]
    %v446 = vld [vmem:[#allocation2 + $0xca8] sm:$0xff]
    %v447 = vld [vmem:[#allocation2 + $0xcb0] sm:$0xff]
    %v448 = vld [vmem:[#allocation2 + $0xcb8] sm:$0xff]
    %v449 = vld [vmem:[#allocation2 + $0xcc0] sm:$0xff]
    %v450 = vld [vmem:[#allocation2 + $0xcc8] sm:$0xff]
    %v451 = vld [vmem:[#allocation2 + $0xcd0] sm:$0xff]
    %v452 = vld [vmem:[#allocation2 + $0xcd8] sm:$0xff]
    %v453 = vld [vmem:[#allocation2 + $0xce0] sm:$0xff]
    %v454 = vld [vmem:[#allocation2 + $0xce8] sm:$0xff]
    %v455 = vld [vmem:[#allocation2 + $0xcf0] sm:$0xff]
    %v456 = vld [vmem:[#allocation2 + $0xcf8] sm:$0xff]
    %v457 = vld [vmem:[#allocation2 + $0xd00] sm:$0xff]
    %v458 = vld [vmem:[#allocation2 + $0xd08] sm:$0xff]
    %v459 = vld [vmem:[#allocation2 + $0xd10] sm:$0xff]
    %v460 = vld [vmem:[#allocation2 + $0xd18] sm:$0xff]
    %v461 = vld [vmem:[#allocation2 + $0xd20] sm:$0xff]
    %v462 = vld [vmem:[#allocation2 + $0xd28] sm:$0xff]
    %v463 = vld [vmem:[#allocation2 + $0xd30] sm:$0xff]
    %v464 = vld [vmem:[#allocation2 + $0xd38] sm:$0xff]
    %v465 = vld [vmem:[#allocation2 + $0xd40] sm:$0xff]
    %v466 = vld [vmem:[#allocation2 + $0xd48] sm:$0xff]
    %v467 = vld [vmem:[#allocation2 + $0xd50] sm:$0xff]
    %v468 = vld [vmem:[#allocation2 + $0xd58] sm:$0xff]
    %v469 = vld [vmem:[#allocation2 + $0xd60] sm:$0xff]
    %v470 = vld [vmem:[#allocation2 + $0xd68] sm:$0xff]
    %v471 = vld [vmem:[#allocation2 + $0xd70] sm:$0xff]
    %v472 = vld [vmem:[#allocation2 + $0xd78] sm:$0xff]
    %v473 = vld [vmem:[#allocation2 + $0xd80] sm:$0xff]
    %v474 = vld [vmem:[#allocation2 + $0xd88] sm:$0xff]
    %v475 = vld [vmem:[#allocation2 + $0xd90] sm:$0xff]
    %v476 = vld [vmem:[#allocation2 + $0xd98] sm:$0xff]
    %v477 = vld [vmem:[#allocation2 + $0xda0] sm:$0xff]
    %v478 = vld [vmem:[#allocation2 + $0xda8] sm:$0xff]
    %v479 = vld [vmem:[#allocation2 + $0xdb0] sm:$0xff]
    %v480 = vld [vmem:[#allocation2 + $0xdb8] sm:$0xff]
    %v481 = vld [vmem:[#allocation2 + $0xdc0] sm:$0xff]
    %v482 = vld [vmem:[#allocation2 + $0xdc8] sm:$0xff]
    %v483 = vld [vmem:[#allocation2 + $0xdd0] sm:$0xff]
    %v484 = vld [vmem:[#allocation2 + $0xdd8] sm:$0xff]
    %v485 = vld [vmem:[#allocation2 + $0xde0] sm:$0xff]
    %v486 = vld [vmem:[#allocation2 + $0xde8] sm:$0xff]
    %v487 = vld [vmem:[#allocation2 + $0xdf0] sm:$0xff]
    %v488 = vld [vmem:[#allocation2 + $0xdf8] sm:$0xff]
    %v489 = vld [vmem:[#allocation2 + $0xe00] sm:$0xff]
    %v490 = vld [vmem:[#allocation2 + $0xe08] sm:$0xff]
    %v491 = vadd.f32 %v41, %v42
    %v492 = vadd.f32 %v491, %v43
    %v493 = vadd.f32 %v492, %v44
    %v494 = vadd.f32 %v493, %v45
    %v495 = vadd.f32 %v494, %v46
    %v496 = vadd.f32 %v495, %v47
    %v497 = vadd.f32 %v496, %v48
    %v498 = vadd.f32 %v497, %v49
    %v499 = vadd.f32 %v498, %v50
    %v500 = vadd.f32 %v499, %v51
    %v501 = vadd.f32 %v500, %v52
    %v502 = vadd.f32 %v501, %v53
    %v503 = vadd.f32 %v502, %v54
    %v504 = vadd.f32 %v503, %v55
    %v505 = vadd.f32 %v504, %v56
    %v506 = vadd.f32 %v505, %v57
    %v507 = vadd.f32 %v506, %v58
    %v508 = vadd.f32 %v507, %v59
    %v509 = vadd.f32 %v508, %v60
    %v510 = vadd.f32 %v509, %v61
    %v511 = vadd.f32 %v510, %v62
    %v512 = vadd.f32 %v511, %v63
    %v513 = vadd.f32 %v512, %v64
    %vm514 = vcmask 523264
    %v515 = vsel %vm514, %v65, 0.0
    %v516 = vadd.f32 %v513, %v515
    %517 = vadd.xlane.f32.xlu0 %v516
    %v518 = vpop.xlane.xlu0 %517
    %v519 = vadd.f32 %v66, %v67
    %v520 = vadd.f32 %v519, %v68
    %v521 = vadd.f32 %v520, %v69
    %v522 = vadd.f32 %v521, %v70
    %v523 = vadd.f32 %v522, %v71
    %v524 = vadd.f32 %v523, %v72
    %v525 = vadd.f32 %v524, %v73
    %v526 = vadd.f32 %v525, %v74
    %v527 = vadd.f32 %v526, %v75
    %v528 = vadd.f32 %v527, %v76
    %v529 = vadd.f32 %v528, %v77
    %v530 = vadd.f32 %v529, %v78
    %v531 = vadd.f32 %v530, %v79
    %v532 = vadd.f32 %v531, %v80
    %v533 = vadd.f32 %v532, %v81
    %v534 = vadd.f32 %v533, %v82
    %v535 = vadd.f32 %v534, %v83
    %v536 = vadd.f32 %v535, %v84
    %v537 = vadd.f32 %v536, %v85
    %v538 = vadd.f32 %v537, %v86
    %v539 = vadd.f32 %v538, %v87
    %v540 = vadd.f32 %v539, %v88
    %v541 = vadd.f32 %v540, %v89
    %v542 = vsel %vm514, %v90, 0.0
    %v543 = vadd.f32 %v541, %v542
    %544 = vadd.xlane.f32.xlu0 %v543
    %v545 = vpop.xlane.xlu0 %544
    %v546 = vadd.f32 %v91, %v92
    %v547 = vadd.f32 %v546, %v93
    %v548 = vadd.f32 %v547, %v94
    %v549 = vadd.f32 %v548, %v95
    %v550 = vadd.f32 %v549, %v96
    %v551 = vadd.f32 %v550, %v97
    %v552 = vadd.f32 %v551, %v98
    %v553 = vadd.f32 %v552, %v99
    %v554 = vadd.f32 %v553, %v100
    %v555 = vadd.f32 %v554, %v101
    %v556 = vadd.f32 %v555, %v102
    %v557 = vadd.f32 %v556, %v103
    %v558 = vadd.f32 %v557, %v104
    %v559 = vadd.f32 %v558, %v105
    %v560 = vadd.f32 %v559, %v106
    %v561 = vadd.f32 %v560, %v107
    %v562 = vadd.f32 %v561, %v108
    %v563 = vadd.f32 %v562, %v109
    %v564 = vadd.f32 %v563, %v110
    %v565 = vadd.f32 %v564, %v111
    %v566 = vadd.f32 %v565, %v112
    %v567 = vadd.f32 %v566, %v113
    %v568 = vadd.f32 %v567, %v114
    %v569 = vsel %vm514, %v115, 0.0
    %v570 = vadd.f32 %v568, %v569
    %571 = vadd.xlane.f32.xlu0 %v570
    %v572 = vpop.xlane.xlu0 %571
    %v573 = vadd.f32 %v116, %v117
    %v574 = vadd.f32 %v573, %v118
    %v575 = vadd.f32 %v574, %v119
    %v576 = vadd.f32 %v575, %v120
    %v577 = vadd.f32 %v576, %v121
    %v578 = vadd.f32 %v577, %v122
    %v579 = vadd.f32 %v578, %v123
    %v580 = vadd.f32 %v579, %v124
    %v581 = vadd.f32 %v580, %v125
    %v582 = vadd.f32 %v581, %v126
    %v583 = vadd.f32 %v582, %v127
    %v584 = vadd.f32 %v583, %v128
    %v585 = vadd.f32 %v584, %v129
    %v586 = vadd.f32 %v585, %v130
    %v587 = vadd.f32 %v586, %v131
    %v588 = vadd.f32 %v587, %v132
    %v589 = vadd.f32 %v588, %v133
    %v590 = vadd.f32 %v589, %v134
    %v591 = vadd.f32 %v590, %v135
    %v592 = vadd.f32 %v591, %v136
    %v593 = vadd.f32 %v592, %v137
    %v594 = vadd.f32 %v593, %v138
    %v595 = vadd.f32 %v594, %v139
    %v596 = vsel %vm514, %v140, 0.0
    %v597 = vadd.f32 %v595, %v596
    %598 = vadd.xlane.f32.xlu0 %v597
    %v599 = vpop.xlane.xlu0 %598
    %v600 = vadd.f32 %v141, %v142
    %v601 = vadd.f32 %v600, %v143
    %v602 = vadd.f32 %v601, %v144
    %v603 = vadd.f32 %v602, %v145
    %v604 = vadd.f32 %v603, %v146
    %v605 = vadd.f32 %v604, %v147
    %v606 = vadd.f32 %v605, %v148
    %v607 = vadd.f32 %v606, %v149
    %v608 = vadd.f32 %v607, %v150
    %v609 = vadd.f32 %v608, %v151
    %v610 = vadd.f32 %v609, %v152
    %v611 = vadd.f32 %v610, %v153
    %v612 = vadd.f32 %v611, %v154
    %v613 = vadd.f32 %v612, %v155
    %v614 = vadd.f32 %v613, %v156
    %v615 = vadd.f32 %v614, %v157
    %v616 = vadd.f32 %v615, %v158
    %v617 = vadd.f32 %v616, %v159
    %v618 = vadd.f32 %v617, %v160
    %v619 = vadd.f32 %v618, %v161
    %v620 = vadd.f32 %v619, %v162
    %v621 = vadd.f32 %v620, %v163
    %v622 = vadd.f32 %v621, %v164
    %v623 = vsel %vm514, %v165, 0.0
    %v624 = vadd.f32 %v622, %v623
    %625 = vadd.xlane.f32.xlu0 %v624
    %v626 = vpop.xlane.xlu0 %625
    %v627 = vadd.f32 %v166, %v167
    %v628 = vadd.f32 %v627, %v168
    %v629 = vadd.f32 %v628, %v169
    %v630 = vadd.f32 %v629, %v170
    %v631 = vadd.f32 %v630, %v171
    %v632 = vadd.f32 %v631, %v172
    %v633 = vadd.f32 %v632, %v173
    %v634 = vadd.f32 %v633, %v174
    %v635 = vadd.f32 %v634, %v175
    %v636 = vadd.f32 %v635, %v176
    %v637 = vadd.f32 %v636, %v177
    %v638 = vadd.f32 %v637, %v178
    %v639 = vadd.f32 %v638, %v179
    %v640 = vadd.f32 %v639, %v180
    %v641 = vadd.f32 %v640, %v181
    %v642 = vadd.f32 %v641, %v182
    %v643 = vadd.f32 %v642, %v183
    %v644 = vadd.f32 %v643, %v184
    %v645 = vadd.f32 %v644, %v185
    %v646 = vadd.f32 %v645, %v186
    %v647 = vadd.f32 %v646, %v187
    %v648 = vadd.f32 %v647, %v188
    %v649 = vadd.f32 %v648, %v189
    %v650 = vsel %vm514, %v190, 0.0
    %v651 = vadd.f32 %v649, %v650
    %652 = vadd.xlane.f32.xlu0 %v651
    %v653 = vpop.xlane.xlu0 %652
    %v654 = vadd.f32 %v191, %v192
    %v655 = vadd.f32 %v654, %v193
    %v656 = vadd.f32 %v655, %v194
    %v657 = vadd.f32 %v656, %v195
    %v658 = vadd.f32 %v657, %v196
    %v659 = vadd.f32 %v658, %v197
    %v660 = vadd.f32 %v659, %v198
    %v661 = vadd.f32 %v660, %v199
    %v662 = vadd.f32 %v661, %v200
    %v663 = vadd.f32 %v662, %v201
    %v664 = vadd.f32 %v663, %v202
    %v665 = vadd.f32 %v664, %v203
    %v666 = vadd.f32 %v665, %v204
    %v667 = vadd.f32 %v666, %v205
    %v668 = vadd.f32 %v667, %v206
    %v669 = vadd.f32 %v668, %v207
    %v670 = vadd.f32 %v669, %v208
    %v671 = vadd.f32 %v670, %v209
    %v672 = vadd.f32 %v671, %v210
    %v673 = vadd.f32 %v672, %v211
    %v674 = vadd.f32 %v673, %v212
    %v675 = vadd.f32 %v674, %v213
    %v676 = vadd.f32 %v675, %v214
    %v677 = vsel %vm514, %v215, 0.0
    %v678 = vadd.f32 %v676, %v677
    %679 = vadd.xlane.f32.xlu0 %v678
    %v680 = vpop.xlane.xlu0 %679
    %v681 = vadd.f32 %v216, %v217
    %v682 = vadd.f32 %v681, %v218
    %v683 = vadd.f32 %v682, %v219
    %v684 = vadd.f32 %v683, %v220
    %v685 = vadd.f32 %v684, %v221
    %v686 = vadd.f32 %v685, %v222
    %v687 = vadd.f32 %v686, %v223
    %v688 = vadd.f32 %v687, %v224
    %v689 = vadd.f32 %v688, %v225
    %v690 = vadd.f32 %v689, %v226
    %v691 = vadd.f32 %v690, %v227
    %v692 = vadd.f32 %v691, %v228
    %v693 = vadd.f32 %v692, %v229
    %v694 = vadd.f32 %v693, %v230
    %v695 = vadd.f32 %v694, %v231
    %v696 = vadd.f32 %v695, %v232
    %v697 = vadd.f32 %v696, %v233
    %v698 = vadd.f32 %v697, %v234
    %v699 = vadd.f32 %v698, %v235
    %v700 = vadd.f32 %v699, %v236
    %v701 = vadd.f32 %v700, %v237
    %v702 = vadd.f32 %v701, %v238
    %v703 = vadd.f32 %v702, %v239
    %v704 = vsel %vm514, %v240, 0.0
    %v705 = vadd.f32 %v703, %v704
    %706 = vadd.xlane.f32.xlu0 %v705
    %v707 = vpop.xlane.xlu0 %706
    %v708 = vadd.f32 %v241, %v242
    %v709 = vadd.f32 %v708, %v243
    %v710 = vadd.f32 %v709, %v244
    %v711 = vadd.f32 %v710, %v245
    %v712 = vadd.f32 %v711, %v246
    %v713 = vadd.f32 %v712, %v247
    %v714 = vadd.f32 %v713, %v248
    %v715 = vadd.f32 %v714, %v249
    %v716 = vadd.f32 %v715, %v250
    %v717 = vadd.f32 %v716, %v251
    %v718 = vadd.f32 %v717, %v252
    %v719 = vadd.f32 %v718, %v253
    %v720 = vadd.f32 %v719, %v254
    %v721 = vadd.f32 %v720, %v255
    %v722 = vadd.f32 %v721, %v256
    %v723 = vadd.f32 %v722, %v257
    %v724 = vadd.f32 %v723, %v258
    %v725 = vadd.f32 %v724, %v259
    %v726 = vadd.f32 %v725, %v260
    %v727 = vadd.f32 %v726, %v261
    %v728 = vadd.f32 %v727, %v262
    %v729 = vadd.f32 %v728, %v263
    %v730 = vadd.f32 %v729, %v264
    %v731 = vsel %vm514, %v265, 0.0
    %v732 = vadd.f32 %v730, %v731
    %733 = vadd.xlane.f32.xlu0 %v732
    %v734 = vpop.xlane.xlu0 %733
    %v735 = vadd.f32 %v266, %v267
    %v736 = vadd.f32 %v735, %v268
    %v737 = vadd.f32 %v736, %v269
    %v738 = vadd.f32 %v737, %v270
    %v739 = vadd.f32 %v738, %v271
    %v740 = vadd.f32 %v739, %v272
    %v741 = vadd.f32 %v740, %v273
    %v742 = vadd.f32 %v741, %v274
    %v743 = vadd.f32 %v742, %v275
    %v744 = vadd.f32 %v743, %v276
    %v745 = vadd.f32 %v744, %v277
    %v746 = vadd.f32 %v745, %v278
    %v747 = vadd.f32 %v746, %v279
    %v748 = vadd.f32 %v747, %v280
    %v749 = vadd.f32 %v748, %v281
    %v750 = vadd.f32 %v749, %v282
    %v751 = vadd.f32 %v750, %v283
    %v752 = vadd.f32 %v751, %v284
    %v753 = vadd.f32 %v752, %v285
    %v754 = vadd.f32 %v753, %v286
    %v755 = vadd.f32 %v754, %v287
    %v756 = vadd.f32 %v755, %v288
    %v757 = vadd.f32 %v756, %v289
    %v758 = vsel %vm514, %v290, 0.0
    %v759 = vadd.f32 %v757, %v758
    %760 = vadd.xlane.f32.xlu0 %v759
    %v761 = vpop.xlane.xlu0 %760
    %v762 = vadd.f32 %v291, %v292
    %v763 = vadd.f32 %v762, %v293
    %v764 = vadd.f32 %v763, %v294
    %v765 = vadd.f32 %v764, %v295
    %v766 = vadd.f32 %v765, %v296
    %v767 = vadd.f32 %v766, %v297
    %v768 = vadd.f32 %v767, %v298
    %v769 = vadd.f32 %v768, %v299
    %v770 = vadd.f32 %v769, %v300
    %v771 = vadd.f32 %v770, %v301
    %v772 = vadd.f32 %v771, %v302
    %v773 = vadd.f32 %v772, %v303
    %v774 = vadd.f32 %v773, %v304
    %v775 = vadd.f32 %v774, %v305
    %v776 = vadd.f32 %v775, %v306
    %v777 = vadd.f32 %v776, %v307
    %v778 = vadd.f32 %v777, %v308
    %v779 = vadd.f32 %v778, %v309
    %v780 = vadd.f32 %v779, %v310
    %v781 = vadd.f32 %v780, %v311
    %v782 = vadd.f32 %v781, %v312
    %v783 = vadd.f32 %v782, %v313
    %v784 = vadd.f32 %v783, %v314
    %v785 = vsel %vm514, %v315, 0.0
    %v786 = vadd.f32 %v784, %v785
    %787 = vadd.xlane.f32.xlu0 %v786
    %v788 = vpop.xlane.xlu0 %787
    %v789 = vadd.f32 %v316, %v317
    %v790 = vadd.f32 %v789, %v318
    %v791 = vadd.f32 %v790, %v319
    %v792 = vadd.f32 %v791, %v320
    %v793 = vadd.f32 %v792, %v321
    %v794 = vadd.f32 %v793, %v322
    %v795 = vadd.f32 %v794, %v323
    %v796 = vadd.f32 %v795, %v324
    %v797 = vadd.f32 %v796, %v325
    %v798 = vadd.f32 %v797, %v326
    %v799 = vadd.f32 %v798, %v327
    %v800 = vadd.f32 %v799, %v328
    %v801 = vadd.f32 %v800, %v329
    %v802 = vadd.f32 %v801, %v330
    %v803 = vadd.f32 %v802, %v331
    %v804 = vadd.f32 %v803, %v332
    %v805 = vadd.f32 %v804, %v333
    %v806 = vadd.f32 %v805, %v334
    %v807 = vadd.f32 %v806, %v335
    %v808 = vadd.f32 %v807, %v336
    %v809 = vadd.f32 %v808, %v337
    %v810 = vadd.f32 %v809, %v338
    %v811 = vadd.f32 %v810, %v339
    %v812 = vsel %vm514, %v340, 0.0
    %v813 = vadd.f32 %v811, %v812
    %814 = vadd.xlane.f32.xlu0 %v813
    %v815 = vpop.xlane.xlu0 %814
    %v816 = vadd.f32 %v341, %v342
    %v817 = vadd.f32 %v816, %v343
    %v818 = vadd.f32 %v817, %v344
    %v819 = vadd.f32 %v818, %v345
    %v820 = vadd.f32 %v819, %v346
    %v821 = vadd.f32 %v820, %v347
    %v822 = vadd.f32 %v821, %v348
    %v823 = vadd.f32 %v822, %v349
    %v824 = vadd.f32 %v823, %v350
    %v825 = vadd.f32 %v824, %v351
    %v826 = vadd.f32 %v825, %v352
    %v827 = vadd.f32 %v826, %v353
    %v828 = vadd.f32 %v827, %v354
    %v829 = vadd.f32 %v828, %v355
    %v830 = vadd.f32 %v829, %v356
    %v831 = vadd.f32 %v830, %v357
    %v832 = vadd.f32 %v831, %v358
    %v833 = vadd.f32 %v832, %v359
    %v834 = vadd.f32 %v833, %v360
    %v835 = vadd.f32 %v834, %v361
    %v836 = vadd.f32 %v835, %v362
    %v837 = vadd.f32 %v836, %v363
    %v838 = vadd.f32 %v837, %v364
    %v839 = vsel %vm514, %v365, 0.0
    %v840 = vadd.f32 %v838, %v839
    %841 = vadd.xlane.f32.xlu0 %v840
    %v842 = vpop.xlane.xlu0 %841
    %v843 = vadd.f32 %v366, %v367
    %v844 = vadd.f32 %v843, %v368
    %v845 = vadd.f32 %v844, %v369
    %v846 = vadd.f32 %v845, %v370
    %v847 = vadd.f32 %v846, %v371
    %v848 = vadd.f32 %v847, %v372
    %v849 = vadd.f32 %v848, %v373
    %v850 = vadd.f32 %v849, %v374
    %v851 = vadd.f32 %v850, %v375
    %v852 = vadd.f32 %v851, %v376
    %v853 = vadd.f32 %v852, %v377
    %v854 = vadd.f32 %v853, %v378
    %v855 = vadd.f32 %v854, %v379
    %v856 = vadd.f32 %v855, %v380
    %v857 = vadd.f32 %v856, %v381
    %v858 = vadd.f32 %v857, %v382
    %v859 = vadd.f32 %v858, %v383
    %v860 = vadd.f32 %v859, %v384
    %v861 = vadd.f32 %v860, %v385
    %v862 = vadd.f32 %v861, %v386
    %v863 = vadd.f32 %v862, %v387
    %v864 = vadd.f32 %v863, %v388
    %v865 = vadd.f32 %v864, %v389
    %v866 = vsel %vm514, %v390, 0.0
    %v867 = vadd.f32 %v865, %v866
    %868 = vadd.xlane.f32.xlu0 %v867
    %v869 = vpop.xlane.xlu0 %868
    %v870 = vadd.f32 %v391, %v392
    %v871 = vadd.f32 %v870, %v393
    %v872 = vadd.f32 %v871, %v394
    %v873 = vadd.f32 %v872, %v395
    %v874 = vadd.f32 %v873, %v396
    %v875 = vadd.f32 %v874, %v397
    %v876 = vadd.f32 %v875, %v398
    %v877 = vadd.f32 %v876, %v399
    %v878 = vadd.f32 %v877, %v400
    %v879 = vadd.f32 %v878, %v401
    %v880 = vadd.f32 %v879, %v402
    %v881 = vadd.f32 %v880, %v403
    %v882 = vadd.f32 %v881, %v404
    %v883 = vadd.f32 %v882, %v405
    %v884 = vadd.f32 %v883, %v406
    %v885 = vadd.f32 %v884, %v407
    %v886 = vadd.f32 %v885, %v408
    %v887 = vadd.f32 %v886, %v409
    %v888 = vadd.f32 %v887, %v410
    %v889 = vadd.f32 %v888, %v411
    %v890 = vadd.f32 %v889, %v412
    %v891 = vadd.f32 %v890, %v413
    %v892 = vadd.f32 %v891, %v414
    %v893 = vsel %vm514, %v415, 0.0
    %v894 = vadd.f32 %v892, %v893
    %895 = vadd.xlane.f32.xlu0 %v894
    %v896 = vpop.xlane.xlu0 %895
    %v897 = vadd.f32 %v416, %v417
    %v898 = vadd.f32 %v897, %v418
    %v899 = vadd.f32 %v898, %v419
    %v900 = vadd.f32 %v899, %v420
    %v901 = vadd.f32 %v900, %v421
    %v902 = vadd.f32 %v901, %v422
    %v903 = vadd.f32 %v902, %v423
    %v904 = vadd.f32 %v903, %v424
    %v905 = vadd.f32 %v904, %v425
    %v906 = vadd.f32 %v905, %v426
    %v907 = vadd.f32 %v906, %v427
    %v908 = vadd.f32 %v907, %v428
    %v909 = vadd.f32 %v908, %v429
    %v910 = vadd.f32 %v909, %v430
    %v911 = vadd.f32 %v910, %v431
    %v912 = vadd.f32 %v911, %v432
    %v913 = vadd.f32 %v912, %v433
    %v914 = vadd.f32 %v913, %v434
    %v915 = vadd.f32 %v914, %v435
    %v916 = vadd.f32 %v915, %v436
    %v917 = vadd.f32 %v916, %v437
    %v918 = vadd.f32 %v917, %v438
    %v919 = vadd.f32 %v918, %v439
    %v920 = vsel %vm514, %v440, 0.0
    %v921 = vadd.f32 %v919, %v920
    %922 = vadd.xlane.f32.xlu0 %v921
    %v923 = vpop.xlane.xlu0 %922
    %v924 = vadd.f32 %v441, %v442
    %v925 = vadd.f32 %v924, %v443
    %v926 = vadd.f32 %v925, %v444
    %v927 = vadd.f32 %v926, %v445
    %v928 = vadd.f32 %v927, %v446
    %v929 = vadd.f32 %v928, %v447
    %v930 = vadd.f32 %v929, %v448
    %v931 = vadd.f32 %v930, %v449
    %v932 = vadd.f32 %v931, %v450
    %v933 = vadd.f32 %v932, %v451
    %v934 = vadd.f32 %v933, %v452
    %v935 = vadd.f32 %v934, %v453
    %v936 = vadd.f32 %v935, %v454
    %v937 = vadd.f32 %v936, %v455
    %v938 = vadd.f32 %v937, %v456
    %v939 = vadd.f32 %v938, %v457
    %v940 = vadd.f32 %v939, %v458
    %v941 = vadd.f32 %v940, %v459
    %v942 = vadd.f32 %v941, %v460
    %v943 = vadd.f32 %v942, %v461
    %v944 = vadd.f32 %v943, %v462
    %v945 = vadd.f32 %v944, %v463
    %v946 = vadd.f32 %v945, %v464
    %v947 = vsel %vm514, %v465, 0.0
    %v948 = vadd.f32 %v946, %v947
    %949 = vadd.xlane.f32.xlu0 %v948
    %v950 = vpop.xlane.xlu0 %949
    %v951 = vadd.f32 %v466, %v467
    %v952 = vadd.f32 %v951, %v468
    %v953 = vadd.f32 %v952, %v469
    %v954 = vadd.f32 %v953, %v470
    %v955 = vadd.f32 %v954, %v471
    %v956 = vadd.f32 %v955, %v472
    %v957 = vadd.f32 %v956, %v473
    %v958 = vadd.f32 %v957, %v474
    %v959 = vadd.f32 %v958, %v475
    %v960 = vadd.f32 %v959, %v476
    %v961 = vadd.f32 %v960, %v477
    %v962 = vadd.f32 %v961, %v478
    %v963 = vadd.f32 %v962, %v479
    %v964 = vadd.f32 %v963, %v480
    %v965 = vadd.f32 %v964, %v481
    %v966 = vadd.f32 %v965, %v482
    %v967 = vadd.f32 %v966, %v483
    %v968 = vadd.f32 %v967, %v484
    %v969 = vadd.f32 %v968, %v485
    %v970 = vadd.f32 %v969, %v486
    %v971 = vadd.f32 %v970, %v487
    %v972 = vadd.f32 %v971, %v488
    %v973 = vadd.f32 %v972, %v489
    %v974 = vsel %vm514, %v490, 0.0
    %v975 = vadd.f32 %v973, %v974
    %976 = vadd.xlane.f32.xlu0 %v975
    %v977 = vpop.xlane.xlu0 %976
    %v978 = vld [vmem:[%s1] sm:$0xff]
    %v979 = vld [vmem:[%s1 + $0x8] sm:$0xff]
    %v980 = vld [vmem:[%s1 + $0x10] sm:$0xff]
    %v981 = vld [vmem:[%s1 + $0x18] sm:$0xff]
    %v982 = vld [vmem:[%s1 + $0x20] sm:$0xff]
    %v983 = vld [vmem:[%s1 + $0x28] sm:$0xff]
    %v984 = vld [vmem:[%s1 + $0x30] sm:$0xff]
    %v985 = vld [vmem:[%s1 + $0x38] sm:$0xff]
    %v986 = vld [vmem:[%s1 + $0x40] sm:$0xff]
    %v987 = vld [vmem:[%s1 + $0x48] sm:$0xff]
    %v988 = vld [vmem:[%s1 + $0x50] sm:$0xff]
    %v989 = vld [vmem:[%s1 + $0x58] sm:$0xff]
    %v990 = vld [vmem:[%s1 + $0x60] sm:$0xff]
    %v991 = vld [vmem:[%s1 + $0x68] sm:$0xff]
    %v992 = vld [vmem:[%s1 + $0x70] sm:$0xff]
    %v993 = vld [vmem:[%s1 + $0x78] sm:$0xff]
    %v994 = vld [vmem:[%s1 + $0x80] sm:$0xff]
    %v995 = vld [vmem:[%s1 + $0x88] sm:$0xff]
    %v996 = vmul.f32 %v518, %v978
    %v997 = vmul.f32 %v545, %v979
    %v998 = vmul.f32 %v572, %v980
    %v999 = vmul.f32 %v599, %v981
    %v1000 = vmul.f32 %v626, %v982
    %v1001 = vmul.f32 %v653, %v983
    %v1002 = vmul.f32 %v680, %v984
    %v1003 = vmul.f32 %v707, %v985
    %v1004 = vmul.f32 %v734, %v986
    %v1005 = vmul.f32 %v761, %v987
    %v1006 = vmul.f32 %v788, %v988
    %v1007 = vmul.f32 %v815, %v989
    %v1008 = vmul.f32 %v842, %v990
    %v1009 = vmul.f32 %v869, %v991
    %v1010 = vmul.f32 %v896, %v992
    %v1011 = vmul.f32 %v923, %v993
    %v1012 = vmul.f32 %v950, %v994
    %v1013 = vmul.f32 %v977, %v995
    %vm1014 = vcmask 48128
    %v1015 = vsel %vm1014, %v996, 0.0
    %v1016 = vsel %vm1014, %v997, 0.0
    %v1017 = vadd.f32 %v1015, %v1016
    %v1018 = vsel %vm1014, %v998, 0.0
    %v1019 = vadd.f32 %v1017, %v1018
    %v1020 = vsel %vm1014, %v999, 0.0
    %v1021 = vadd.f32 %v1019, %v1020
    %v1022 = vsel %vm1014, %v1000, 0.0
    %v1023 = vadd.f32 %v1021, %v1022
    %v1024 = vsel %vm1014, %v1001, 0.0
    %v1025 = vadd.f32 %v1023, %v1024
    %v1026 = vsel %vm1014, %v1002, 0.0
    %v1027 = vadd.f32 %v1025, %v1026
    %v1028 = vsel %vm1014, %v1003, 0.0
    %v1029 = vadd.f32 %v1027, %v1028
    %v1030 = vsel %vm1014, %v1004, 0.0
    %v1031 = vadd.f32 %v1029, %v1030
    %v1032 = vsel %vm1014, %v1005, 0.0
    %v1033 = vadd.f32 %v1031, %v1032
    %v1034 = vsel %vm1014, %v1006, 0.0
    %v1035 = vadd.f32 %v1033, %v1034
    %v1036 = vsel %vm1014, %v1007, 0.0
    %v1037 = vadd.f32 %v1035, %v1036
    %v1038 = vsel %vm1014, %v1008, 0.0
    %v1039 = vadd.f32 %v1037, %v1038
    %v1040 = vsel %vm1014, %v1009, 0.0
    %v1041 = vadd.f32 %v1039, %v1040
    %v1042 = vsel %vm1014, %v1010, 0.0
    %v1043 = vadd.f32 %v1041, %v1042
    %v1044 = vsel %vm1014, %v1011, 0.0
    %v1045 = vadd.f32 %v1043, %v1044
    %v1046 = vsel %vm1014, %v1012, 0.0
    %v1047 = vadd.f32 %v1045, %v1046
    %v1048 = vsel %vm1014, %v1013, 0.0
    %v1049 = vadd.f32 %v1047, %v1048
    %v1050 = vrot.slane %v1049, 4
    %v1051 = vadd.f32 %v1049, %v1050
    %v1052 = vrot.slane %v1051, 2
    %v1053 = vadd.f32 %v1051, %v1052
    %v1054 = vrot.slane %v1053, 1
    %v1055 = vadd.f32 %v1053, %v1054
    %v1056 = vld [vmem:[#allocation5] sm:$0x1]
    %v1057 = vadd.f32 %v1055, %v1056
    %vm1058 = vcmask 40960
    %1059 = vst.msk [vmem:[#allocation7] sm:$0x1] %vm1058, %v1057
    // Predicated region
    $region22: #{tpu_custom_call.1} parent=1 // pred_check
      _
    $region23: #{tpu_custom_call.1} parent=1 // pred_check_branch
      %1061 = sbr.rel (0) target = $region25
    $region24: #{tpu_custom_call.1} parent=1 // pred_region
      %s1063 = ssub.s32 16, 16
      %1064 = vsyncadd [#allocation4], %s1063
      %s1066 = sshll.u32 [#allocation7], 4
      %s1067 = int_to_ptr.vmem [resolvable:$true] %s1066
      %1069 = dma.vmem_to_hbm [thread:$0]  %s1067, 16, %s3, [#allocation4]
    $region25: #{tpu_custom_call.1} parent=1 // pred_fallthru
      _
    // Predicated region
    $region26: #{tpu_custom_call.1} parent=1 // pred_check
      _
    $region27: #{tpu_custom_call.1} parent=1 // pred_check_branch
      %1071 = sbr.rel (0) target = $region29
    $region28: #{tpu_custom_call.1} parent=1 // pred_region
      %1072 = dma.done [#allocation4], 16
    $region29: #{tpu_custom_call.1} parent=1 // pred_fallthru
      _
    %1073 = vsyncpa [#allocation3], 1
    %1074 = vsyncpa [#allocation6], 1
    %1075 = vsyncpa [#allocation4], 1

</llo_original>
